<compile_context>
chip_gen: v7x
topology: tpu7x:2x2x1
jax: 0.10.0
libtpu: 0.0.40
codegen_flags: <defaults>
</compile_context>

<pallas_src>
import jax
import jax.numpy as jnp
from jax.experimental import pallas as pl
from jax.experimental.pallas import tpu as pltpu


def _critic_kernel(xT_ref, w1t_ref, b1_ref, w2_ref, b2_ref, out_ref):
    # fc1 (transposed): (H, D) @ (D, TB) -> (H, TB); f32 accumulation on MXU.
    h = jnp.dot(w1t_ref[...], xT_ref[...], preferred_element_type=jnp.float32)
    # Bias (H, 1) broadcast over lanes + ReLU on the VPU, in f32.
    h = jnp.maximum(h + b1_ref[...], 0.0)

    if w2_ref.shape[1] == 1:
        # O == 1 value head: VPU multiply + sublane (XLU) reduce over H keeps
        # the result (1, TB) lane-dense and never touches the MXU.
        v = jnp.sum(h * w2_ref[...], axis=0, keepdims=True)          # (1, TB)
    else:
        # General small-O fallback: contract over H -> (O, TB), batch on lanes.
        v = jax.lax.dot_general(
            w2_ref[...], h, (((0,), (0,)), ((), ())),
            preferred_element_type=jnp.float32)                      # (O, TB)

    out_ref[...] = (v + b2_ref[...]).astype(out_ref.dtype)


def _batch_axis_semantics(num_steps):
    """CORE_PARALLEL on multi-TensorCore chips (v7x), PARALLEL otherwise."""
    if num_steps > 1:
        try:
            info = pltpu.get_tpu_info()
            for name in ("num_cores", "num_tensorcores", "cores_per_chip",
                         "num_cores_per_chip", "tensorcore_count"):
                n = getattr(info, name, None)
                if isinstance(n, int) and n > 1:
                    return (pltpu.CORE_PARALLEL,)
        except Exception:
            pass
    return (pltpu.PARALLEL,)


def critic_forward(x, w1, b1, w2, b2, *, block_b=8192, compute_dtype=None,
                   core_parallel=None):
    """value = relu(x @ w1 + b1) @ w2 + b2.

    x: (B, D); w1: (D, H); b1: (H,) or (1, H); w2: (H, O); b2: (O,) or (1, O)
    -> (B, O).

    compute_dtype: optionally cast x/w1 (e.g. jnp.bfloat16) to halve the
    dominant HBM stream; accumulation and epilogue stay f32 in the kernel.
    core_parallel: force/forbid CORE_PARALLEL on the batch grid axis
    (None = auto-detect multi-core chips).
    """
    B, D = x.shape
    H = w1.shape[1]
    O = w2.shape[1]
    out_dtype = x.dtype

    # Lane-dense layout plumbing: batch on the lane axis everywhere.
    xT = jnp.transpose(x)                                    # (D, B)
    w1t = jnp.transpose(w1)                                  # (H, D)
    if compute_dtype is not None:
        xT = xT.astype(compute_dtype)
        w1t = w1t.astype(compute_dtype)
    b1c = jnp.reshape(b1, (H, 1)).astype(jnp.float32)        # (H, 1)
    w2c = jnp.asarray(w2, jnp.float32)                       # (H, O)
    b2c = jnp.reshape(b2, (O, 1)).astype(jnp.float32)        # (O, 1)

    # Batch tile: multiple of 128 (lane constraint); big by default to
    # amortize per-step overhead; small batches collapse to one grid step.
    tb = min(int(block_b), pl.cdiv(B, 128) * 128)
    tb = max(128, (tb // 128) * 128)
    grid = (pl.cdiv(B, tb),)   # ragged last tile handled by Pallas clamping

    # Explicit VMEM budget: double-buffered x/out blocks + f32 activations.
    in_elt = jnp.dtype(xT.dtype).itemsize
    x_blk_bytes = D * tb * in_elt
    out_blk_bytes = max(8, O) * tb * jnp.dtype(out_dtype).itemsize
    h_bytes = H * tb * 4
    vmem_limit = int(min(
        48 << 20,
        max(16 << 20, 2 * (x_blk_bytes + out_blk_bytes) + 4 * h_bytes + (2 << 20))))

    if core_parallel is None:
        dims = _batch_axis_semantics(grid[0])
    else:
        dims = ((pltpu.CORE_PARALLEL if core_parallel else pltpu.PARALLEL),)

    flops = 2 * B * D * H + 2 * B * H * O
    bytes_accessed = int(
        xT.size * in_elt + w1t.size * in_elt
        + (b1c.size + w2c.size + b2c.size) * 4
        + B * O * jnp.dtype(out_dtype).itemsize)

    outT = pl.pallas_call(
        _critic_kernel,
        out_shape=jax.ShapeDtypeStruct((O, B), out_dtype),
        grid_spec=pl.GridSpec(
            grid=grid,
            in_specs=[
                pl.BlockSpec((D, tb), lambda i: (0, i)),   # x^T: streamed, lane-dense
                pl.BlockSpec((H, D), lambda i: (0, 0)),    # w1^T: resident
                pl.BlockSpec((H, 1), lambda i: (0, 0)),    # b1 column: resident
                pl.BlockSpec((H, O), lambda i: (0, 0)),    # fcv weight column(s): resident
                pl.BlockSpec((O, 1), lambda i: (0, 0)),    # b2 column: resident
            ],
            out_specs=pl.BlockSpec((O, tb), lambda i: (0, i)),
        ),
        compiler_params=pltpu.CompilerParams(
            dimension_semantics=dims,
            vmem_limit_bytes=vmem_limit,
        ),
        cost_estimate=pl.CostEstimate(
            flops=flops, transcendentals=0, bytes_accessed=bytes_accessed),
    )(xT, w1t, b1c, w2c, b2c)

    # (O, B) -> (B, O): trivial (B*O elements) layout fix-up.
    return jnp.transpose(outT)


def init_params(key, num_inputs, hidden_size=32, num_outputs=1, dtype=jnp.float32):
    """Deterministic synthetic init (nn.Linear-style scale; W stored (in, out))."""
    k1, k2, k3, k4 = jax.random.split(key, 4)
    s1 = 1.0 / jnp.sqrt(jnp.array(num_inputs, dtype))
    s2 = 1.0 / jnp.sqrt(jnp.array(hidden_size, dtype))
    w1 = jax.random.uniform(k1, (num_inputs, hidden_size), dtype, -s1, s1)
    b1 = jax.random.uniform(k2, (1, hidden_size), dtype, -s1, s1)
    w2 = jax.random.uniform(k3, (hidden_size, num_outputs), dtype, -s2, s2)
    b2 = jax.random.uniform(k4, (1, num_outputs), dtype, -s2, s2)
    return w1, b1, w2, b2


def _reference(x, w1, b1, w2, b2):
    return jnp.maximum(x @ w1 + b1, 0.0) @ w2 + b2


if __name__ == "__main__":
    key = jax.random.PRNGKey(0)
    kx1, kx2, kp = jax.random.split(key, 3)

    num_inputs = 16
    hidden_size = 32   # module default
    num_outputs = 1
    w1, b1, w2, b2 = init_params(kp, num_inputs, hidden_size, num_outputs)

    # Small case: single grid step, ragged lane tile (B=8 < tb=128).
    x_small = jax.random.normal(kx1, (8, num_inputs), jnp.float32)
    v_small = jax.block_until_ready(critic_forward(x_small, w1, b1, w2, b2))
    ref_small = _reference(x_small, w1, b1, w2, b2)
    assert v_small.shape == (8, num_outputs)
    assert jnp.allclose(v_small, ref_small, atol=1e-5, rtol=1e-5)

    # Multi-step case with a ragged last tile (300 = 2*128 + 44): exercises the
    # batch grid, resident weights, and the no-pad block-clamping path.
    x_big = jax.random.normal(kx2, (300, num_inputs), jnp.float32)
    v_big = jax.block_until_ready(critic_forward(x_big, w1, b1, w2, b2, block_b=128))
    ref_big = _reference(x_big, w1, b1, w2, b2)
    assert v_big.shape == (300, num_outputs)
    assert jnp.allclose(v_big, ref_big, atol=1e-5, rtol=1e-5)

    # bf16 x/w1 stream (memory-roofline win on v6e/v7x); f32 accumulation and
    # epilogue inside the kernel, so a looser tolerance is expected here.
    v_bf16 = jax.block_until_ready(
        critic_forward(x_big, w1, b1, w2, b2, compute_dtype=jnp.bfloat16))
    assert v_bf16.shape == (300, num_outputs)
    assert jnp.allclose(v_bf16, ref_big, atol=5e-2, rtol=5e-2)

    print("KERNEL_OK")
</pallas_src>

<mosaic_0001>
module attributes {stable_mosaic.version = 11 : i64} {
  func.func @_critic_kernel(%arg0: i32, %arg1: memref<16x128xf32, #tpu.memory_space<vmem>>, %arg2: memref<32x16xf32, #tpu.memory_space<vmem>>, %arg3: memref<32x1xf32, #tpu.memory_space<vmem>>, %arg4: memref<32x1xf32, #tpu.memory_space<vmem>>, %arg5: memref<1x1xf32, #tpu.memory_space<vmem>>, %arg6: memref<1x128xf32, #tpu.memory_space<vmem>>) attributes {dimension_semantics = [#tpu.dimension_semantics<parallel>], iteration_bounds = array<i64: 1>, scalar_prefetch = 0 : i64, scratch_operands = 0 : i64, tpu.core_type = #tpu.core_type<tc>, window_params = [{transform_indices = @transform_0, window_bounds = array<i64: 16, 128>}, {pipeline_mode = #tpu.pipeline_mode<synchronous>, transform_indices = @transform_1, window_bounds = array<i64: 32, 16>}, {pipeline_mode = #tpu.pipeline_mode<synchronous>, transform_indices = @transform_2, window_bounds = array<i64: 32, 1>}, {pipeline_mode = #tpu.pipeline_mode<synchronous>, transform_indices = @transform_3, window_bounds = array<i64: 32, 1>}, {pipeline_mode = #tpu.pipeline_mode<synchronous>, transform_indices = @transform_4, window_bounds = array<i64: 1, 1>}, {transform_indices = @transform_5, window_bounds = array<i64: 1, 128>}]} {
    %c0 = arith.constant 0 : index
    %c0_0 = arith.constant 0 : index
    %0 = vector.load %arg2[%c0, %c0_0] : memref<32x16xf32, #tpu.memory_space<vmem>>, vector<32x16xf32>
    %c0_1 = arith.constant 0 : index
    %c0_2 = arith.constant 0 : index
    %1 = vector.load %arg1[%c0_1, %c0_2] : memref<16x128xf32, #tpu.memory_space<vmem>>, vector<16x128xf32>
    %cst = arith.constant dense<0.000000e+00> : vector<32x128xf32>
    %2 = tpu.matmul %0, %1, %cst {dimension_numbers = #tpu.dot_dimension_numbers<[1], [0], [0], [1], [0, 0, 1, 1], [], []>} : vector<32x16xf32>, vector<16x128xf32>, vector<32x128xf32> -> vector<32x128xf32>
    %c0_3 = arith.constant 0 : index
    %c0_4 = arith.constant 0 : index
    %3 = vector.load %arg3[%c0_3, %c0_4] : memref<32x1xf32, #tpu.memory_space<vmem>>, vector<32x1xf32>
    %4 = vector.broadcast %3 : vector<32x1xf32> to vector<32x128xf32>
    %5 = arith.addf %2, %4 : vector<32x128xf32>
    %cst_5 = arith.constant 0.000000e+00 : f32
    %6 = vector.broadcast %cst_5 : f32 to vector<32x128xf32>
    %7 = arith.maximumf %5, %6 : vector<32x128xf32>
    %c0_6 = arith.constant 0 : index
    %c0_7 = arith.constant 0 : index
    %8 = vector.load %arg4[%c0_6, %c0_7] : memref<32x1xf32, #tpu.memory_space<vmem>>, vector<32x1xf32>
    %9 = vector.broadcast %8 : vector<32x1xf32> to vector<32x128xf32>
    %10 = arith.mulf %7, %9 : vector<32x128xf32>
    %cst_8 = arith.constant dense<0.000000e+00> : vector<128xf32>
    %11 = vector.multi_reduction <add>, %10, %cst_8 [0] : vector<32x128xf32> to vector<128xf32>
    %12 = vector.shape_cast %11 : vector<128xf32> to vector<1x128xf32>
    %c0_9 = arith.constant 0 : index
    %c0_10 = arith.constant 0 : index
    %13 = vector.load %arg5[%c0_9, %c0_10] : memref<1x1xf32, #tpu.memory_space<vmem>>, vector<1x1xf32>
    %14 = vector.broadcast %13 : vector<1x1xf32> to vector<1x128xf32>
    %15 = arith.addf %12, %14 : vector<1x128xf32>
    %c0_11 = arith.constant 0 : index
    %c0_12 = arith.constant 0 : index
    %16 = vector.load %arg6[%c0_11, %c0_12] : memref<1x128xf32, #tpu.memory_space<vmem>>, vector<1x128xf32>
    tpu.vector_store %arg6[%c0_11, %c0_12], %15 {strides = array<i32>} : memref<1x128xf32, #tpu.memory_space<vmem>>, vector<1x128xf32>,
    return
  }
  func.func @transform_0(%arg0: i32) -> (i32, i32) {
    %c0_i32 = arith.constant 0 : i32
    %c0_i32_0 = arith.constant 0 : i32
    return %c0_i32, %arg0 : i32, i32
  }
  func.func @transform_1(%arg0: i32) -> (i32, i32) {
    %c0_i32 = arith.constant 0 : i32
    %c0_i32_0 = arith.constant 0 : i32
    %c0_i32_1 = arith.constant 0 : i32
    return %c0_i32, %c0_i32_0 : i32, i32
  }
  func.func @transform_2(%arg0: i32) -> (i32, i32) {
    %c0_i32 = arith.constant 0 : i32
    %c0_i32_0 = arith.constant 0 : i32
    %c0_i32_1 = arith.constant 0 : i32
    return %c0_i32, %c0_i32_0 : i32, i32
  }
  func.func @transform_3(%arg0: i32) -> (i32, i32) {
    %c0_i32 = arith.constant 0 : i32
    %c0_i32_0 = arith.constant 0 : i32
    %c0_i32_1 = arith.constant 0 : i32
    return %c0_i32, %c0_i32_0 : i32, i32
  }
  func.func @transform_4(%arg0: i32) -> (i32, i32) {
    %c0_i32 = arith.constant 0 : i32
    %c0_i32_0 = arith.constant 0 : i32
    %c0_i32_1 = arith.constant 0 : i32
    return %c0_i32, %c0_i32_0 : i32, i32
  }
  func.func @transform_5(%arg0: i32) -> (i32, i32) {
    %c0_i32 = arith.constant 0 : i32
    %c0_i32_0 = arith.constant 0 : i32
    return %c0_i32, %arg0 : i32, i32
  }
}

</mosaic_0001>

<llo_original>
// kernel: tpu_custom_call.1
$region0: #{tpu_custom_call.1}
  #allocation0 [shape = 'u32[]', space=smem, size = 0x4, offset = 0x4, fixed_abs, tag = 'smem constant byte address 0x4 - core index']
  #allocation1 [shape = 'u32[144,128]{1,0:T(1,128)}', space=vmem, size = 0x12000, scoped, tag = 'internal scratch']
  #allocation2 [shape = 'f32[1,1]{1,0:T(1,128)S(1)}', space=vmem, size = 0x200, scoped, tag = 'scoped memory for tpu_custom_call.1']
  %s0 = inlined_call_operand.vmem [shape: f32[16,8], index: 0, kind: input, shape index: {}]
  %s1 = inlined_call_operand.vmem [shape: f32[32,16], index: 1, kind: input, shape index: {}]
  %s2 = inlined_call_operand.vmem [shape: f32[32,1], index: 2, kind: input, shape index: {}]
  %s3 = inlined_call_operand.vmem [shape: f32[32,1], index: 3, kind: input, shape index: {}]
  %s4 = inlined_call_operand.<no memory space> [shape: f32[1,1], index: 4, kind: input, shape index: {}]
  %s5 = inlined_call_operand.hbm [shape: f32[1,8], index: 5, kind: output, shape index: {}]
  %s6 = sld [smem:[#allocation0]]
  $region30: #{tpu_custom_call.1} parent=0
    _
  %s8 = ssub.s32 1, %s6
  %s9 = scalar_select 0, %s8, %s6
  %v10 = vstv %s4
  %11 = vst [vmem:[#allocation2] sm:$0x1] %v10
  $region1: #{tpu_custom_call.1} parent=0
    #allocation3 [shape = 'u8[512]{0}', space=vmem, size = 0x400, scoped, tag = 'output window, operand 0, single buffered']
    #allocation4 [shape = 's32[1]{0}', space=sflag, size = 0x4, scoped, tag = 'scoped memory for tpu_custom_call.1']
    %12 = vsyncpa [#allocation4], 0
    // Predicated region
    $region2: #{tpu_custom_call.1} parent=1 // pred_check
      _
    $region3: #{tpu_custom_call.1} parent=1 // pred_check_branch
      %14 = sbr.rel (0) target = $region5
    $region4: #{tpu_custom_call.1} parent=1 // pred_region
      _
    $region5: #{tpu_custom_call.1} parent=1 // pred_fallthru
      _
    // Predicated region
    $region6: #{tpu_custom_call.1} parent=1 // pred_check
      _
    $region7: #{tpu_custom_call.1} parent=1 // pred_check_branch
      %16 = sbr.rel (0) target = $region9
    $region8: #{tpu_custom_call.1} parent=1 // pred_region
      _
    $region9: #{tpu_custom_call.1} parent=1 // pred_fallthru
      _
    // Predicated region
    $region10: #{tpu_custom_call.1} parent=1 // pred_check
      _
    $region11: #{tpu_custom_call.1} parent=1 // pred_check_branch
      %18 = sbr.rel (0) target = $region13
    $region12: #{tpu_custom_call.1} parent=1 // pred_region
      _
    $region13: #{tpu_custom_call.1} parent=1 // pred_fallthru
      _
    // Predicated region
    $region14: #{tpu_custom_call.1} parent=1 // pred_check
      _
    $region15: #{tpu_custom_call.1} parent=1 // pred_check_branch
      %20 = sbr.rel (0) target = $region17
    $region16: #{tpu_custom_call.1} parent=1 // pred_region
      _
    $region17: #{tpu_custom_call.1} parent=1 // pred_fallthru
      _
    // Predicated region
    $region18: #{tpu_custom_call.1} parent=1 // pred_check
      _
    $region19: #{tpu_custom_call.1} parent=1 // pred_check_branch
      %22 = sbr.rel (0) target = $region21
    $region20: #{tpu_custom_call.1} parent=1 // pred_region
      _
    $region21: #{tpu_custom_call.1} parent=1 // pred_fallthru
      _
    %v23 = vld [vmem:[%s1] sm:$0xff]
    %v24 = vld [vmem:[%s1 + $0x8] sm:$0xff]
    %v25 = vld [vmem:[%s1 + $0x10] sm:$0xff]
    %v26 = vld [vmem:[%s1 + $0x18] sm:$0xff]
    %v27 = vld [vmem:[%s0] sm:$0xff]
    %v28 = vld [vmem:[%s0 + $0x8] sm:$0xff]
    %v29 = vld [vmem:[%s2] sm:$0xff]
    %v30 = vld [vmem:[%s2 + $0x8] sm:$0xff]
    %v31 = vld [vmem:[%s2 + $0x10] sm:$0xff]
    %v32 = vld [vmem:[%s2 + $0x18] sm:$0xff]
    %34 = vset.pattern.permute.xlu0 0
    %35 = vperm.xlu0 %34, %v29
    %v36 = vpop.permute.xlu0 %35
    %39 = vset.pattern.permute.xlu0 0
    %40 = vperm.xlu0 %39, %v30
    %v41 = vpop.permute.xlu0 %40
    %44 = vset.pattern.permute.xlu0 0
    %45 = vperm.xlu0 %44, %v31
    %v46 = vpop.permute.xlu0 %45
    %49 = vset.pattern.permute.xlu0 0
    %50 = vperm.xlu0 %49, %v32
    %v51 = vpop.permute.xlu0 %50
    %vm53 = vcmask 130048
    %v55 = vsel %vm53, %v23, 0
    %v58 = vsel %vm53, %v24, 0
    %v61 = vsel %vm53, %v25, 0
    %v64 = vsel %vm53, %v26, 0
    %66 = vmatprep.subr.mxu0 0.0
    %67 = vmatpush1.msra.mxu0 %v27
    %68 = vmatprep.subr.mxu0 0.0
    %69 = vmatpush1.msra.mxu0 %v28
    %70 = vmatprep.subr.mxu0 0.0
    %71 = vmatpush1.msra.mxu0 0.0
    %72 = vmatprep.subr.mxu0 0.0
    %73 = vmatpush1.msra.mxu0 0.0
    %74 = vmatprep.subr.mxu0 0.0
    %75 = vmatpush1.msra.mxu0 0.0
    %76 = vmatprep.subr.mxu0 0.0
    %77 = vmatpush1.msra.mxu0 0.0
    %78 = vmatprep.subr.mxu0 0.0
    %79 = vmatpush1.msra.mxu0 0.0
    %80 = vmatprep.subr.mxu0 0.0
    %81 = vmatpush1.msra.mxu0 0.0
    %82 = vmatprep.subr.mxu0 0.0
    %83 = vmatpush1.msra.mxu0 0.0
    %84 = vmatprep.subr.mxu0 0.0
    %85 = vmatpush1.msra.mxu0 0.0
    %86 = vmatprep.subr.mxu0 0.0
    %87 = vmatpush1.msra.mxu0 0.0
    %88 = vmatprep.subr.mxu0 0.0
    %89 = vmatpush1.msra.mxu0 0.0
    %90 = vmatprep.subr.mxu0 0.0
    %91 = vmatpush1.msra.mxu0 0.0
    %92 = vmatprep.subr.mxu0 0.0
    %93 = vmatpush1.msra.mxu0 0.0
    %94 = vmatprep.subr.mxu0 0.0
    %95 = vmatpush1.msra.mxu0 0.0
    %96 = vmatprep.subr.mxu0 0.0
    %97 = vmatpush1.msra.mxu0 0.0
    %98 = vmatprep.subr.mxu0 0.0
    %99 = vmatpush1.msra.mxu0 0.0
    %100 = vmatprep.subr.mxu0 0.0
    %101 = vmatpush1.msra.mxu0 0.0
    %102 = vmatprep.subr.mxu0 0.0
    %103 = vmatpush1.msra.mxu0 0.0
    %104 = vmatprep.subr.mxu0 0.0
    %105 = vmatpush1.msra.mxu0 0.0
    %106 = vmatprep.subr.mxu0 0.0
    %107 = vmatpush1.msra.mxu0 0.0
    %108 = vmatprep.subr.mxu0 0.0
    %109 = vmatpush1.msra.mxu0 0.0
    %110 = vmatprep.subr.mxu0 0.0
    %111 = vmatpush1.msra.mxu0 0.0
    %112 = vmatprep.subr.mxu0 0.0
    %113 = vmatpush1.msra.mxu0 0.0
    %114 = vmatprep.subr.mxu0 0.0
    %115 = vmatpush1.msra.mxu0 0.0
    %116 = vmatprep.subr.mxu0 0.0
    %117 = vmatpush1.msra.mxu0 0.0
    %118 = vmatprep.subr.mxu0 0.0
    %119 = vmatpush1.msra.mxu0 0.0
    %120 = vmatprep.subr.mxu0 0.0
    %121 = vmatpush1.msra.mxu0 0.0
    %122 = vmatprep.subr.mxu0 0.0
    %123 = vmatpush1.msra.mxu0 0.0
    %124 = vmatprep.subr.mxu0 0.0
    %125 = vmatpush1.msra.mxu0 0.0
    %126 = vmatprep.subr.mxu0 0.0
    %127 = vmatpush1.msra.mxu0 0.0
    %128 = vmatprep.subr.mxu0 0.0
    %129 = vmatpush1.msra.mxu0 0.0
    %130 = vmatprep.mubr.f32.mxu0 0.0
    %131 = vmatmul.mubr.f32.gmra.mrb[0].mxu0 %v55
    %v132 = vpop.f32.mrb[0].mxu0
    %v133 = vadd.f32 %v36, %v132
    %v134 = vpop.f32.mrb[0].mxu0
    %135 = vmatprep.mubr.f32.mxu0 0.0
    %136 = vmatmul.mubr.f32.gmra.mrb[0].mxu0 %v58
    %v137 = vpop.f32.mrb[0].mxu0
    %v138 = vadd.f32 %v41, %v137
    %v139 = vpop.f32.mrb[0].mxu0
    %140 = vmatprep.mubr.f32.mxu0 0.0
    %141 = vmatmul.mubr.f32.gmra.mrb[0].mxu0 %v61
    %v142 = vpop.f32.mrb[0].mxu0
    %v143 = vadd.f32 %v46, %v142
    %v144 = vpop.f32.mrb[0].mxu0
    %145 = vmatprep.mubr.f32.mxu0 0.0
    %146 = vmatmul.mubr.f32.gmra.mrb[0].mxu0 %v64
    %v147 = vpop.f32.mrb[0].mxu0
    %v148 = vadd.f32 %v51, %v147
    %v149 = vpop.f32.mrb[0].mxu0
    %150 = vdwg.mxu0
    %v151 = vmax.f32 %v133, 0.0
    %v152 = vmax.f32 %v138, 0.0
    %v153 = vmax.f32 %v143, 0.0
    %v154 = vmax.f32 %v148, 0.0
    %v155 = vld [vmem:[%s3] sm:$0xff]
    %v156 = vld [vmem:[%s3 + $0x8] sm:$0xff]
    %v157 = vld [vmem:[%s3 + $0x10] sm:$0xff]
    %v158 = vld [vmem:[%s3 + $0x18] sm:$0xff]
    %160 = vset.pattern.permute.xlu0 0
    %161 = vperm.xlu0 %160, %v155
    %v162 = vpop.permute.xlu0 %161
    %165 = vset.pattern.permute.xlu0 0
    %166 = vperm.xlu0 %165, %v156
    %v167 = vpop.permute.xlu0 %166
    %170 = vset.pattern.permute.xlu0 0
    %171 = vperm.xlu0 %170, %v157
    %v172 = vpop.permute.xlu0 %171
    %175 = vset.pattern.permute.xlu0 0
    %176 = vperm.xlu0 %175, %v158
    %v177 = vpop.permute.xlu0 %176
    %v179 = vmul.f32 %v151, %v162
    %v180 = vmul.f32 %v152, %v167
    %v181 = vmul.f32 %v153, %v172
    %v182 = vmul.f32 %v154, %v177
    %v183 = vadd.f32 %v179, %v180
    %v184 = vadd.f32 %v183, %v181
    %v185 = vadd.f32 %v184, %v182
    %v186 = vrot.slane %v185, 4
    %v187 = vadd.f32 %v185, %v186
    %v188 = vrot.slane %v187, 2
    %v189 = vadd.f32 %v187, %v188
    %v190 = vrot.slane %v189, 1
    %v191 = vadd.f32 %v189, %v190
    %v192 = vld [vmem:[#allocation2] sm:$0x1]
    %194 = vset.pattern.permute.xlu0 0
    %195 = vperm.xlu0 %194, %v192
    %v196 = vpop.permute.xlu0 %195
    %v198 = vlaneseq
    %v199 = vshrl.u32 %v198, 7
    %v200 = vsub.s32 0, %v199
    %v201 = vrot.slane %v196, %v200
    %v202 = vadd.f32 %v191, %v201
    %203 = vst [vmem:[#allocation3] sm:$0x1] %v202
    // Predicated region
    $region22: #{tpu_custom_call.1} parent=1 // pred_check
      _
    $region23: #{tpu_custom_call.1} parent=1 // pred_check_branch
      %205 = sbr.rel (0) target = $region25
    $region24: #{tpu_custom_call.1} parent=1 // pred_region
      %s207 = ssub.s32 16, 16
      %208 = vsyncadd [#allocation4], %s207
      %s210 = sshll.u32 [#allocation3], 4
      %s211 = int_to_ptr.vmem [resolvable:$true] %s210
      %213 = dma.vmem_to_hbm [thread:$0]  %s211, 16, %s5, [#allocation4]
    $region25: #{tpu_custom_call.1} parent=1 // pred_fallthru
      _
    // Predicated region
    $region26: #{tpu_custom_call.1} parent=1 // pred_check
      _
    $region27: #{tpu_custom_call.1} parent=1 // pred_check_branch
      %215 = sbr.rel (0) target = $region29
    $region28: #{tpu_custom_call.1} parent=1 // pred_region
      %216 = dma.done [#allocation4], 16
    $region29: #{tpu_custom_call.1} parent=1 // pred_fallthru
      _
    %217 = vsyncpa [#allocation4], 1

</llo_original>
